<compile_context>
chip_gen: v5e
topology: v5e:2x2
jax: 0.10.0
libtpu: 0.0.40
codegen_flags: <defaults>
</compile_context>

<pallas_src>
import functools
import math

import jax
import jax.numpy as jnp
from jax.experimental import pallas as pl
from jax.experimental.pallas import tpu as pltpu


# --------------------------------------------------------------------------- helpers
def _pick_tile(n, target):
    """Largest row-tile <= target that divides n and is a multiple of 8, else n."""
    if n <= target:
        return n
    for t in range(target, 7, -1):
        if n % t == 0 and t % 8 == 0:
            return t
    return n


def _cparams(semantics, block_bytes):
    # ~2x the resident blocks (double buffering) + headroom, clamped to a value
    # that is valid on v5e / v6e / v7x scoped-VMEM limits.
    limit = int(min(max(2 * block_bytes + (8 << 20), 16 << 20), 32 << 20))
    return pltpu.CompilerParams(dimension_semantics=semantics,
                                vmem_limit_bytes=limit)


# --------------------------------------------------------------------------- kernels
def _linear_kernel(x_ref, w_ref, b_ref, o_ref):
    # bf16 MXU inputs, f32 accumulation; bias add and all VPU math stay in f32.
    acc = jnp.dot(x_ref[...].astype(jnp.bfloat16),
                  w_ref[...].astype(jnp.bfloat16),
                  preferred_element_type=jnp.float32)
    o_ref[...] = (acc + b_ref[...]).astype(o_ref.dtype)


def linear(x, w, b, *, tm_target=512):
    """x: (M, K), w: (K, N) [in, out], b: (N,) -> (M, N). Tiled over M rows."""
    M, K = x.shape
    N = w.shape[1]
    tm = _pick_tile(M, tm_target)
    blk_bytes = 4 * (tm * K + K * N + N + tm * N)
    return pl.pallas_call(
        _linear_kernel,
        out_shape=jax.ShapeDtypeStruct((M, N), x.dtype),
        grid=(M // tm,),
        in_specs=[
            pl.BlockSpec((tm, K), lambda i: (i, 0)),   # K kept whole (K <= C*sr^2, small)
            pl.BlockSpec((K, N), lambda i: (0, 0)),
            pl.BlockSpec((1, N), lambda i: (0, 0)),
        ],
        out_specs=pl.BlockSpec((tm, N), lambda i: (i, 0)),
        compiler_params=_cparams(("parallel",), blk_bytes),
    )(x, w, b.reshape(1, N))


def _qkv_kernel(x_ref, w_ref, b_ref, q_ref, k_ref, v_ref):
    # One (tm, 3C) matmul for fused q/k/v (wider MXU N), lane-dense per-output stores.
    y = jnp.dot(x_ref[...].astype(jnp.bfloat16),
                w_ref[...].astype(jnp.bfloat16),
                preferred_element_type=jnp.float32) + b_ref[...]
    C = q_ref.shape[-1]
    q_ref[...] = y[:, :C].astype(q_ref.dtype)
    k_ref[...] = y[:, C:2 * C].astype(k_ref.dtype)
    v_ref[...] = y[:, 2 * C:].astype(v_ref.dtype)


def qkv_proj(x, w_qkv, b_qkv, C, *, tm_target=512):
    """Fused q/kv projections (sr_ratio == 1 path): x (M, C) -> q, k, v each (M, C)."""
    M, K = x.shape
    tm = _pick_tile(M, tm_target)
    blk_bytes = 4 * (tm * K + K * 3 * C + 3 * C + 3 * tm * C)
    out_sd = jax.ShapeDtypeStruct((M, C), x.dtype)
    return pl.pallas_call(
        _qkv_kernel,
        out_shape=(out_sd, out_sd, out_sd),
        grid=(M // tm,),
        in_specs=[
            pl.BlockSpec((tm, K), lambda i: (i, 0)),
            pl.BlockSpec((K, 3 * C), lambda i: (0, 0)),
            pl.BlockSpec((1, 3 * C), lambda i: (0, 0)),
        ],
        out_specs=(pl.BlockSpec((tm, C), lambda i: (i, 0)),) * 3,
        compiler_params=_cparams(("parallel",), blk_bytes),
    )(x, w_qkv, b_qkv.reshape(1, 3 * C))


def _sr_ln_kv_kernel(p_ref, wsr_ref, bsr_ref, g_ref, beta_ref, wkv_ref, bkv_ref,
                     k_ref, v_ref):
    # Conv2d(kernel=stride=sr) expressed as a matmul on non-overlapping patches,
    # fused with LayerNorm (f32) and the kv projection -> saves two HBM round-trips
    # of the (B*Nk, C) activation and two pallas_call launches.
    xs = jnp.dot(p_ref[...].astype(jnp.bfloat16),
                 wsr_ref[...].astype(jnp.bfloat16),
                 preferred_element_type=jnp.float32) + bsr_ref[...]
    mu = jnp.mean(xs, axis=-1, keepdims=True)
    var = jnp.mean((xs - mu) ** 2, axis=-1, keepdims=True)
    xs = (xs - mu) * jax.lax.rsqrt(var + 1e-5) * g_ref[...] + beta_ref[...]   # torch eps
    kv = jnp.dot(xs.astype(jnp.bfloat16),
                 wkv_ref[...].astype(jnp.bfloat16),
                 preferred_element_type=jnp.float32) + bkv_ref[...]
    C = k_ref.shape[-1]
    k_ref[...] = kv[:, :C].astype(k_ref.dtype)
    v_ref[...] = kv[:, C:].astype(v_ref.dtype)


def sr_ln_kv(patches, w_sr, b_sr, g, beta, w_kv, b_kv, *, tm_target=512):
    """patches: (M, C*sr*sr) -> (k, v) each (M, C). Tiled over M rows."""
    M, K = patches.shape
    C = w_sr.shape[1]
    tm = _pick_tile(M, tm_target)
    blk_bytes = 4 * (tm * K + K * C + 2 * C * C + 5 * C + 2 * tm * C)
    out_sd = jax.ShapeDtypeStruct((M, C), patches.dtype)
    return pl.pallas_call(
        _sr_ln_kv_kernel,
        out_shape=(out_sd, out_sd),
        grid=(M // tm,),
        in_specs=[
            pl.BlockSpec((tm, K), lambda i: (i, 0)),
            pl.BlockSpec((K, C), lambda i: (0, 0)),
            pl.BlockSpec((1, C), lambda i: (0, 0)),
            pl.BlockSpec((1, C), lambda i: (0, 0)),
            pl.BlockSpec((1, C), lambda i: (0, 0)),
            pl.BlockSpec((C, 2 * C), lambda i: (0, 0)),
            pl.BlockSpec((1, 2 * C), lambda i: (0, 0)),
        ],
        out_specs=(pl.BlockSpec((tm, C), lambda i: (i, 0)),) * 2,
        compiler_params=_cparams(("parallel",), blk_bytes),
    )(patches, w_sr, b_sr.reshape(1, C), g.reshape(1, C), beta.reshape(1, C),
      w_kv, b_kv.reshape(1, 2 * C))


def _attn_kernel(q_ref, k_ref, v_ref, o_ref, *, scale, num_heads):
    # q_ref: (1, tq, C), k_ref/v_ref: (1, Nk, C), o_ref: (1, tq, C) — lane-dense blocks.
    C = q_ref.shape[-1]
    d = C // num_heads
    q = q_ref[0]                       # (tq, C) f32
    k = k_ref[0]                       # (Nk, C)
    v = v_ref[0]                       # (Nk, C)
    outs = []
    for h in range(num_heads):         # static unroll: all heads in one grid step
        sl = slice(h * d, (h + 1) * d)
        qh = q[:, sl].astype(jnp.bfloat16)
        kh = k[:, sl].astype(jnp.bfloat16)
        vh = v[:, sl].astype(jnp.bfloat16)
        # Contract on d of BOTH operands (no explicit k.T relayout before the MXU).
        s = jax.lax.dot_general(qh, kh, (((1,), (1,)), ((), ())),
                                preferred_element_type=jnp.float32) * scale   # (tq, Nk)
        s = s - jnp.max(s, axis=-1, keepdims=True)        # f32 softmax math
        p = jnp.exp(s)                                    # EUP
        p = p * pl.reciprocal(jnp.sum(p, axis=-1, keepdims=True), approx=True)
        outs.append(jnp.dot(p.astype(jnp.bfloat16), vh,
                            preferred_element_type=jnp.float32))              # (tq, d)
    # Head merge on registers; single lane-dense (tq, C) store.
    o_ref[0] = jnp.concatenate(outs, axis=-1).astype(o_ref.dtype)


def mha(q, k, v, scale, num_heads, *, tq_target=256):
    """q: (B, N, C), k/v: (B, Nk, C) -> (B, N, C). Grid over (batch, q-tiles)."""
    B, N, C = q.shape
    Nk = k.shape[1]
    tq = _pick_tile(N, tq_target)
    # TODO(synk): for very long un-reduced KV sequences, add a third ("arbitrary")
    # grid axis over Nk tiles with an online-softmax accumulator (flash style).
    # SegFormer's spatially-reduced Nk (<= ~1024) fits comfortably per q-tile.
    blk_bytes = 4 * (2 * tq * C + 2 * Nk * C) + 4 * num_heads * tq * Nk
    return pl.pallas_call(
        functools.partial(_attn_kernel, scale=scale, num_heads=num_heads),
        out_shape=jax.ShapeDtypeStruct((B, N, C), q.dtype),
        grid=(B, N // tq),
        in_specs=[
            pl.BlockSpec((1, tq, C), lambda b, i: (b, i, 0)),
            pl.BlockSpec((1, Nk, C), lambda b, i: (b, 0, 0)),
            pl.BlockSpec((1, Nk, C), lambda b, i: (b, 0, 0)),
        ],
        out_specs=pl.BlockSpec((1, tq, C), lambda b, i: (b, i, 0)),
        compiler_params=_cparams(("parallel", "parallel"), blk_bytes),
    )(q, k, v)


# --------------------------------------------------------------------------- forward
def attention_forward(x, H, W, params, *, num_heads, sr_ratio):
    """x: (B, N, C) with N == H*W. Matches Attention.forward at inference."""
    B, N, C = x.shape
    d = C // num_heads
    scale = d ** (-0.5)
    x2 = x.reshape(B * N, C)

    if sr_ratio > 1:
        q = linear(x2, params["w_q"], params["b_q"]).reshape(B, N, C)
        Hs, Ws = H // sr_ratio, W // sr_ratio
        Nk = Hs * Ws
        # Non-overlapping sr x sr patch extraction == im2col of the stride-sr conv.
        # Pure layout glue done once (XLA); channel order (c, kh, kw) matches w_sr.
        patches = (x.reshape(B, Hs, sr_ratio, Ws, sr_ratio, C)
                    .transpose(0, 1, 3, 5, 2, 4)
                    .reshape(B * Nk, C * sr_ratio * sr_ratio))
        k, v = sr_ln_kv(patches, params["w_sr"], params["b_sr"],
                        params["ln_g"], params["ln_b"],
                        params["w_kv"], params["b_kv"])
        k = k.reshape(B, Nk, C)
        v = v.reshape(B, Nk, C)
    else:
        # q and kv share the same input -> one fused projection kernel.
        w_qkv = jnp.concatenate([params["w_q"], params["w_kv"]], axis=1)
        b_qkv = jnp.concatenate([params["b_q"], params["b_kv"]], axis=0)
        q, k, v = qkv_proj(x2, w_qkv, b_qkv, C)
        q, k, v = [t.reshape(B, -1, C) for t in (q, k, v)]

    o = mha(q, k, v, scale, num_heads)                 # (B, N, C), token-major
    out = linear(o.reshape(B * N, C), params["w_proj"], params["b_proj"])
    return out.reshape(B, N, C)


# --------------------------------------------------------------------------- reference
def _mm(a, b):
    # Mirrors the kernels' bf16 MXU inputs + f32 accumulation.
    return jnp.dot(a.astype(jnp.bfloat16), b.astype(jnp.bfloat16),
                   preferred_element_type=jnp.float32)


def attention_reference(x, H, W, params, *, num_heads, sr_ratio):
    B, N, C = x.shape
    d = C // num_heads
    scale = d ** (-0.5)
    q = (_mm(x.reshape(B * N, C), params["w_q"]) + params["b_q"]).reshape(B, N, num_heads, d)
    q = q.transpose(0, 2, 1, 3)
    if sr_ratio > 1:
        Hs, Ws = H // sr_ratio, W // sr_ratio
        Nk = Hs * Ws
        p = x.reshape(B, Hs, sr_ratio, Ws, sr_ratio, C).transpose(0, 1, 3, 5, 2, 4)
        p = p.reshape(B * Nk, C * sr_ratio * sr_ratio)
        xs = _mm(p, params["w_sr"]) + params["b_sr"]
        mu = xs.mean(-1, keepdims=True)
        var = ((xs - mu) ** 2).mean(-1, keepdims=True)
        xs = (xs - mu) * jax.lax.rsqrt(var + 1e-5) * params["ln_g"] + params["ln_b"]
        kv_in, Nkv = xs, Nk
    else:
        kv_in, Nkv = x.reshape(B * N, C), N
    kv = (_mm(kv_in, params["w_kv"]) + params["b_kv"]).reshape(B, Nkv, 2, num_heads, d)
    kv = kv.transpose(2, 0, 3, 1, 4)
    k, v = kv[0], kv[1]
    s = jnp.einsum("bhnd,bhmd->bhnm", q.astype(jnp.bfloat16), k.astype(jnp.bfloat16),
                   preferred_element_type=jnp.float32) * scale
    p_att = jax.nn.softmax(s, axis=-1)
    o = jnp.einsum("bhnm,bhmd->bhnd", p_att.astype(jnp.bfloat16), v.astype(jnp.bfloat16),
                   preferred_element_type=jnp.float32)
    o = o.transpose(0, 2, 1, 3).reshape(B, N, C)
    return (_mm(o.reshape(B * N, C), params["w_proj"]) + params["b_proj"]).reshape(B, N, C)


# --------------------------------------------------------------------------- main
if __name__ == "__main__":
    B, Himg, Wimg = 2, 8, 8
    C, num_heads, sr_ratio = 32, 4, 2
    N = Himg * Wimg
    dtype = jnp.float32

    key = jax.random.PRNGKey(0)
    ks = jax.random.split(key, 8)

    # Init mirroring the module's _init_weights (shapes per __init__):
    #   Linear weights ~ trunc_normal(std=0.02) (approx by normal), biases 0
    #   qkv_bias=False -> q / kv biases kept as explicit zeros
    #   Conv2d(sr) weight ~ N(0, sqrt(2/fan_out)), bias 0; LayerNorm gamma=1, beta=0
    fan_out_sr = sr_ratio * sr_ratio * C
    params = {
        "w_q": (jax.random.normal(ks[0], (C, C)) * 0.02).astype(dtype),          # (in, out)
        "b_q": jnp.zeros((C,), dtype),
        "w_kv": (jax.random.normal(ks[1], (C, 2 * C)) * 0.02).astype(dtype),
        "b_kv": jnp.zeros((2 * C,), dtype),
        "w_proj": (jax.random.normal(ks[2], (C, C)) * 0.02).astype(dtype),
        "b_proj": jnp.zeros((C,), dtype),
        # torch Conv2d weight (out_C, in_C, kH, kW) -> matmul layout (in_C*kH*kW, out_C)
        "w_sr": ((jax.random.normal(ks[3], (C, C, sr_ratio, sr_ratio))
                  * math.sqrt(2.0 / fan_out_sr))
                 .transpose(1, 2, 3, 0)
                 .reshape(C * sr_ratio * sr_ratio, C)
                 .astype(dtype)),
        "b_sr": jnp.zeros((C,), dtype),
        "ln_g": jnp.ones((C,), dtype),
        "ln_b": jnp.zeros((C,), dtype),
    }

    x = jax.random.normal(ks[4], (B, N, C), dtype)

    for sr in (sr_ratio, 1):   # exercise both the sr-reduction path and the fused-qkv path
        out = attention_forward(x, Himg, Wimg, params, num_heads=num_heads, sr_ratio=sr)
        out = jax.block_until_ready(out)
        ref = attention_reference(x, Himg, Wimg, params, num_heads=num_heads, sr_ratio=sr)
        assert out.shape == (B, N, C)
        # Tolerance covers the approx EUP reciprocal in the softmax; matmul precision
        # (bf16 inputs, f32 accumulation) is mirrored by the reference.
        assert jnp.allclose(out, ref, rtol=5e-3, atol=2e-4), f"mismatch (sr_ratio={sr})"

    print("KERNEL_OK")
</pallas_src>

<mosaic_0001>
module attributes {stable_mosaic.version = 11 : i64} {
  func.func @_linear_kernel(%arg0: i32, %arg1: memref<128x32xf32, #tpu.memory_space<vmem>>, %arg2: memref<32x32xf32, #tpu.memory_space<vmem>>, %arg3: memref<1x32xf32, #tpu.memory_space<vmem>>, %arg4: memref<128x32xf32, #tpu.memory_space<vmem>>) attributes {dimension_semantics = [#tpu.dimension_semantics<parallel>], iteration_bounds = array<i64: 1>, scalar_prefetch = 0 : i64, scratch_operands = 0 : i64, tpu.core_type = #tpu.core_type<tc>, window_params = [{transform_indices = @transform_0, window_bounds = array<i64: 128, 32>}, {pipeline_mode = #tpu.pipeline_mode<synchronous>, transform_indices = @transform_1, window_bounds = array<i64: 32, 32>}, {pipeline_mode = #tpu.pipeline_mode<synchronous>, transform_indices = @transform_2, window_bounds = array<i64: 1, 32>}, {transform_indices = @transform_3, window_bounds = array<i64: 128, 32>}]} {
    %c0 = arith.constant 0 : index
    %c0_0 = arith.constant 0 : index
    %0 = vector.load %arg1[%c0, %c0_0] : memref<128x32xf32, #tpu.memory_space<vmem>>, vector<128x32xf32>
    %1 = arith.truncf %0 : vector<128x32xf32> to vector<128x32xbf16>
    %c0_1 = arith.constant 0 : index
    %c0_2 = arith.constant 0 : index
    %2 = vector.load %arg2[%c0_1, %c0_2] : memref<32x32xf32, #tpu.memory_space<vmem>>, vector<32x32xf32>
    %3 = arith.truncf %2 : vector<32x32xf32> to vector<32x32xbf16>
    %cst = arith.constant dense<0.000000e+00> : vector<128x32xf32>
    %4 = tpu.matmul %1, %3, %cst {dimension_numbers = #tpu.dot_dimension_numbers<[1], [0], [0], [1], [0, 0, 1, 1], [], []>} : vector<128x32xbf16>, vector<32x32xbf16>, vector<128x32xf32> -> vector<128x32xf32>
    %c0_3 = arith.constant 0 : index
    %c0_4 = arith.constant 0 : index
    %5 = vector.load %arg3[%c0_3, %c0_4] : memref<1x32xf32, #tpu.memory_space<vmem>>, vector<1x32xf32>
    %6 = vector.broadcast %5 : vector<1x32xf32> to vector<128x32xf32>
    %7 = arith.addf %4, %6 : vector<128x32xf32>
    %c0_5 = arith.constant 0 : index
    %c0_6 = arith.constant 0 : index
    %8 = vector.load %arg4[%c0_5, %c0_6] : memref<128x32xf32, #tpu.memory_space<vmem>>, vector<128x32xf32>
    tpu.vector_store %arg4[%c0_5, %c0_6], %7 {strides = array<i32>} : memref<128x32xf32, #tpu.memory_space<vmem>>, vector<128x32xf32>,
    return
  }
  func.func @transform_0(%arg0: i32) -> (i32, i32) {
    %c0_i32 = arith.constant 0 : i32
    %c0_i32_0 = arith.constant 0 : i32
    return %arg0, %c0_i32 : i32, i32
  }
  func.func @transform_1(%arg0: i32) -> (i32, i32) {
    %c0_i32 = arith.constant 0 : i32
    %c0_i32_0 = arith.constant 0 : i32
    %c0_i32_1 = arith.constant 0 : i32
    return %c0_i32, %c0_i32_0 : i32, i32
  }
  func.func @transform_2(%arg0: i32) -> (i32, i32) {
    %c0_i32 = arith.constant 0 : i32
    %c0_i32_0 = arith.constant 0 : i32
    %c0_i32_1 = arith.constant 0 : i32
    return %c0_i32, %c0_i32_0 : i32, i32
  }
  func.func @transform_3(%arg0: i32) -> (i32, i32) {
    %c0_i32 = arith.constant 0 : i32
    %c0_i32_0 = arith.constant 0 : i32
    return %arg0, %c0_i32 : i32, i32
  }
}

</mosaic_0001>

<llo_original>
// kernel: tpu_custom_call.1
$region0: #{tpu_custom_call.1}
  #allocation0 [shape = 'u32[]', space=smem, size = 0x4, offset = 0x4, fixed_abs, tag = 'smem constant byte address 0x4 - core index']
  #allocation1 [shape = 'u32[72,128]{1,0:T(1,128)}', space=vmem, size = 0x9000, scoped, tag = 'internal scratch']
  %s0 = inlined_call_operand.vmem [shape: f32[128,32], index: 0, kind: input, shape index: {}]
  %s1 = inlined_call_operand.vmem [shape: f32[32,32], index: 1, kind: input, shape index: {}]
  %s2 = inlined_call_operand.vmem [shape: f32[1,32], index: 2, kind: input, shape index: {}]
  %s3 = inlined_call_operand.vmem [shape: f32[128,32], index: 3, kind: output, shape index: {}]
  %s4 = sld [smem:[#allocation0]]
  $region22: #{tpu_custom_call.1} parent=0
    _
  %s6 = ssub.s32 1, %s4
  %s7 = scalar_select 0, %s6, %s4
  // Predicated region
  $region2: #{tpu_custom_call.1} parent=0 // pred_check
    _
  $region3: #{tpu_custom_call.1} parent=0 // pred_check_branch
    %9 = sbr.rel (0) target = $region5
  $region4: #{tpu_custom_call.1} parent=0 // pred_region
    _
  $region5: #{tpu_custom_call.1} parent=0 // pred_fallthru
    _
  // Predicated region
  $region6: #{tpu_custom_call.1} parent=0 // pred_check
    _
  $region7: #{tpu_custom_call.1} parent=0 // pred_check_branch
    %11 = sbr.rel (0) target = $region9
  $region8: #{tpu_custom_call.1} parent=0 // pred_region
    _
  $region9: #{tpu_custom_call.1} parent=0 // pred_fallthru
    _
  // Predicated region
  $region10: #{tpu_custom_call.1} parent=0 // pred_check
    _
  $region11: #{tpu_custom_call.1} parent=0 // pred_check_branch
    %13 = sbr.rel (0) target = $region13
  $region12: #{tpu_custom_call.1} parent=0 // pred_region
    _
  $region13: #{tpu_custom_call.1} parent=0 // pred_fallthru
    _
  %v15 = vld [vmem:[%s0] sm:$0xff]
  %v16 = vld [vmem:[%s0 + $0x8] sm:$0xff]
  %v17 = vld [vmem:[%s0 + $0x10] sm:$0xff]
  %v18 = vld [vmem:[%s0 + $0x18] sm:$0xff]
  %v19 = vld [vmem:[%s0 + $0x20] sm:$0xff]
  %v20 = vld [vmem:[%s0 + $0x28] sm:$0xff]
  %v21 = vld [vmem:[%s0 + $0x30] sm:$0xff]
  %v22 = vld [vmem:[%s0 + $0x38] sm:$0xff]
  %v23 = vld [vmem:[%s0 + $0x40] sm:$0xff]
  %v24 = vld [vmem:[%s0 + $0x48] sm:$0xff]
  %v25 = vld [vmem:[%s0 + $0x50] sm:$0xff]
  %v26 = vld [vmem:[%s0 + $0x58] sm:$0xff]
  %v27 = vld [vmem:[%s0 + $0x60] sm:$0xff]
  %v28 = vld [vmem:[%s0 + $0x68] sm:$0xff]
  %v29 = vld [vmem:[%s0 + $0x70] sm:$0xff]
  %v30 = vld [vmem:[%s0 + $0x78] sm:$0xff]
  %v31 = vpack.c.bf16 %v16, %v15
  %v32 = vpack.c.bf16 %v18, %v17
  %v33 = vpack.c.bf16 %v20, %v19
  %v34 = vpack.c.bf16 %v22, %v21
  %v35 = vpack.c.bf16 %v24, %v23
  %v36 = vpack.c.bf16 %v26, %v25
  %v37 = vpack.c.bf16 %v28, %v27
  %v38 = vpack.c.bf16 %v30, %v29
  %v39 = vld [vmem:[%s1] sm:$0xff]
  %v40 = vld [vmem:[%s1 + $0x8] sm:$0xff]
  %v41 = vld [vmem:[%s1 + $0x10] sm:$0xff]
  %v42 = vld [vmem:[%s1 + $0x18] sm:$0xff]
  %v43 = vpack.c.bf16 %v40, %v39
  %v44 = vpack.c.bf16 %v42, %v41
  %v45 = vld [vmem:[%s2] sm:$0x1]
  %v47 = vperm.slane %v45, 0
  %vm49 = vcmask 261120
  %v51 = vsel %vm49, %v31, 0
  %v54 = vsel %vm49, %v32, 0
  %v57 = vsel %vm49, %v33, 0
  %v60 = vsel %vm49, %v34, 0
  %v63 = vsel %vm49, %v35, 0
  %v66 = vsel %vm49, %v36, 0
  %v69 = vsel %vm49, %v37, 0
  %v72 = vsel %vm49, %v38, 0
  %74 = vmatpush.bf16.msra.mxu0 0
  %75 = vmatpush.bf16.msra.mxu0 0
  %76 = vmatpush.bf16.msra.mxu0 0
  %77 = vmatpush.bf16.msra.mxu0 0
  %78 = vmatpush.bf16.msra.mxu0 0
  %79 = vmatpush.bf16.msra.mxu0 0
  %80 = vmatpush.bf16.msra.mxu0 %v44
  %81 = vmatpush.bf16.msra.mxu0 %v43
  %82 = vmatmul.bf16.gmra.mxu0 %v51
  %v83 = vpop.f32.mrf.mxu0
  %v84 = vadd.f32 %v47, %v83
  %v85 = vpop.f32.mrf.mxu0
  %v86 = vadd.f32 %v47, %v85
  %87 = vmatmul.bf16.gmra.mxu0 %v54
  %v88 = vpop.f32.mrf.mxu0
  %v89 = vadd.f32 %v47, %v88
  %v90 = vpop.f32.mrf.mxu0
  %v91 = vadd.f32 %v47, %v90
  %92 = vmatmul.bf16.gmra.mxu0 %v57
  %v93 = vpop.f32.mrf.mxu0
  %v94 = vadd.f32 %v47, %v93
  %v95 = vpop.f32.mrf.mxu0
  %v96 = vadd.f32 %v47, %v95
  %97 = vmatmul.bf16.gmra.mxu0 %v60
  %v98 = vpop.f32.mrf.mxu0
  %v99 = vadd.f32 %v47, %v98
  %v100 = vpop.f32.mrf.mxu0
  %v101 = vadd.f32 %v47, %v100
  %102 = vmatmul.bf16.gmra.mxu0 %v63
  %v103 = vpop.f32.mrf.mxu0
  %v104 = vadd.f32 %v47, %v103
  %v105 = vpop.f32.mrf.mxu0
  %v106 = vadd.f32 %v47, %v105
  %107 = vmatmul.bf16.gmra.mxu0 %v66
  %v108 = vpop.f32.mrf.mxu0
  %v109 = vadd.f32 %v47, %v108
  %v110 = vpop.f32.mrf.mxu0
  %v111 = vadd.f32 %v47, %v110
  %112 = vmatmul.bf16.gmra.mxu0 %v69
  %v113 = vpop.f32.mrf.mxu0
  %v114 = vadd.f32 %v47, %v113
  %v115 = vpop.f32.mrf.mxu0
  %v116 = vadd.f32 %v47, %v115
  %117 = vmatmul.bf16.gmra.mxu0 %v72
  %v118 = vpop.f32.mrf.mxu0
  %v119 = vadd.f32 %v47, %v118
  %v120 = vpop.f32.mrf.mxu0
  %v121 = vadd.f32 %v47, %v120
  %122 = vdwg.mxu0
  %123 = vst.msk [vmem:[%s3] sm:$0xff] %vm49, %v84
  %124 = vst.msk [vmem:[%s3 + $0x8] sm:$0xff] %vm49, %v86
  %125 = vst.msk [vmem:[%s3 + $0x10] sm:$0xff] %vm49, %v89
  %126 = vst.msk [vmem:[%s3 + $0x18] sm:$0xff] %vm49, %v91
  %127 = vst.msk [vmem:[%s3 + $0x20] sm:$0xff] %vm49, %v94
  %128 = vst.msk [vmem:[%s3 + $0x28] sm:$0xff] %vm49, %v96
  %129 = vst.msk [vmem:[%s3 + $0x30] sm:$0xff] %vm49, %v99
  %130 = vst.msk [vmem:[%s3 + $0x38] sm:$0xff] %vm49, %v101
  %131 = vst.msk [vmem:[%s3 + $0x40] sm:$0xff] %vm49, %v104
  %132 = vst.msk [vmem:[%s3 + $0x48] sm:$0xff] %vm49, %v106
  %133 = vst.msk [vmem:[%s3 + $0x50] sm:$0xff] %vm49, %v109
  %134 = vst.msk [vmem:[%s3 + $0x58] sm:$0xff] %vm49, %v111
  %135 = vst.msk [vmem:[%s3 + $0x60] sm:$0xff] %vm49, %v114
  %136 = vst.msk [vmem:[%s3 + $0x68] sm:$0xff] %vm49, %v116
  %137 = vst.msk [vmem:[%s3 + $0x70] sm:$0xff] %vm49, %v119
  %138 = vst.msk [vmem:[%s3 + $0x78] sm:$0xff] %vm49, %v121
  // Predicated region
  $region14: #{tpu_custom_call.1} parent=0 // pred_check
    _
  $region15: #{tpu_custom_call.1} parent=0 // pred_check_branch
    %140 = sbr.rel (0) target = $region17
  $region16: #{tpu_custom_call.1} parent=0 // pred_region
    _
  $region17: #{tpu_custom_call.1} parent=0 // pred_fallthru
    _
  // Predicated region
  $region18: #{tpu_custom_call.1} parent=0 // pred_check
    _
  $region19: #{tpu_custom_call.1} parent=0 // pred_check_branch
    %142 = sbr.rel (0) target = $region21
  $region20: #{tpu_custom_call.1} parent=0 // pred_region
    _
  $region21: #{tpu_custom_call.1} parent=0 // pred_fallthru
    _

</llo_original>
